<compile_context>
chip_gen: v5e
topology: v5e:2x2
jax: 0.10.0
libtpu: 0.0.40
codegen_flags: <defaults>
</compile_context>

<pallas_src>
import functools

import jax
import jax.numpy as jnp
from jax.experimental import pallas as pl
from jax.experimental.pallas import tpu as pltpu


def _round_up(x, m):
    return (x + m - 1) // m * m


# --------------------------------------------------------------------------------------
# Kernel 1: phase-decomposed ConvTranspose2d as a single bf16 GEMM (+ f32 bias).
# --------------------------------------------------------------------------------------
def _up_gemm_kernel(x_ref, w_ref, b_ref, o_ref):
    """(TM, 9*Cin) @ (9*Cin, TN) + bias — bf16 operands, f32 accumulation.

    x_ref: (TM, 9*Cin) bf16 im2col'ed input rows
    w_ref: (9*Cin, TN) bf16 phase-stacked deconv weight tile
    b_ref: (1, TN)     f32
    o_ref: (TM, TN)    bf16
    """
    acc = jnp.dot(x_ref[...], w_ref[...], preferred_element_type=jnp.float32)
    o_ref[...] = (acc + b_ref[...]).astype(o_ref.dtype)


# --------------------------------------------------------------------------------------
# Kernel 2: fused channel-concat + Conv2d(3x3, pad=1) + bias + ReLU, halo-tiled rows.
# --------------------------------------------------------------------------------------
def _conv3x3_cat_relu_kernel(x_hbm, w_ref, b_ref, o_ref, buf, sem, *, tr, wup, wch):
    """TR output rows per grid step; the (TR+2)-row halo slab is manually DMA'd from
    HBM into a double-buffered VMEM scratch (next tile prefetched during compute).

    x_hbm: (B, Hp, Wp, K) bf16 in HBM   (K = n_concat*Cout, Hp = Hup+2, Wp = Wup+2)
    w_ref: (9, K, Cout)   bf16 resident in VMEM
    b_ref: (1, Cout)      f32
    o_ref: (tr, wup, Cout) f32 output tile (batch dim squeezed)
    buf:   (2, tr+2, Wp, K) bf16 double-buffered halo slab
    sem:   DMA semaphores (2,)
    """
    b = pl.program_id(0)
    i = pl.program_id(1)
    ni = pl.num_programs(1)
    cf = w_ref.shape[2]

    def row_copy(bb, ii, slot):
        return pltpu.make_async_copy(
            x_hbm.at[bb, pl.ds(ii * tr, tr + 2)], buf.at[slot], sem.at[slot])

    slot = i % 2

    @pl.when(i == 0)                       # prime the pipeline (once per batch element)
    def _():
        row_copy(b, i, slot).start()

    @pl.when(i + 1 < ni)                   # prefetch the next row tile of this batch
    def _():
        row_copy(b, i + 1, (i + 1) % 2).start()

    row_copy(b, i, slot).wait()            # wait for the current halo slab

    bias = b_ref[...]                      # (1, Cout) f32, hoisted out of the loops
    for ry in range(tr):                   # static unroll (LLO-visible)
        for w0 in range(0, wup, wch):      # width chunks keep the f32 acc in vregs
            cw = min(wch, wup - w0)
            acc = jnp.broadcast_to(bias, (cw, cf)).astype(jnp.float32)
            for ky in range(3):
                # aligned segment covering padded cols [w0, w0+cw+2)
                seg = buf[slot, ry + ky, pl.ds(w0, cw + 2), :]          # (cw+2, K) bf16
                for kx in range(3):
                    c = jnp.dot(seg, w_ref[ky * 3 + kx],
                                preferred_element_type=jnp.float32)     # (cw+2, Cout)
                    if kx:
                        # apply the +kx column shift on the f32 result via the XLU
                        c = pltpu.roll(c, shift=cw + 2 - kx, axis=0)
                    acc = acc + c[:cw]                                  # aligned slice
            o_ref[ry, pl.ds(w0, cw), :] = jnp.maximum(acc, 0.0).astype(o_ref.dtype)


class UnetUpPallas:
    """Pallas TPU version of unetUp (n_concat=2 by default):
       up   = ConvTranspose2d(in_size, out_size, kernel_size=12, stride=4, padding=2)
       conv = Conv2d(n_concat*out_size, out_size, 3, stride=1, padding=1) + ReLU."""

    def __init__(self, in_size, out_size, key, n_concat=2):
        self.in_size, self.out_size, self.n_concat = in_size, out_size, n_concat
        k1, k2, k3, k4 = jax.random.split(key, 4)
        # PyTorch parameter shapes:
        #   ConvTranspose2d.weight: (in_size, out_size, 12, 12), bias: (out_size,)
        #   Conv2d.weight:          (out_size, n_concat*out_size, 3, 3), bias: (out_size,)
        self.w_up = 0.05 * jax.random.normal(k1, (in_size, out_size, 12, 12), jnp.float32)
        self.b_up = 0.05 * jax.random.normal(k2, (out_size,), jnp.float32)
        cat_ch = n_concat * out_size
        self.w_c = 0.05 * jax.random.normal(k3, (out_size, cat_ch, 3, 3), jnp.float32)
        self.b_c = 0.05 * jax.random.normal(k4, (out_size,), jnp.float32)

        # --- phase-decomposed ConvTranspose weights -> single GEMM weight (bf16) ---
        # For output phase (r, c) and 3x3 sub-position (ky', kx'):
        #   Wsub = W[ci, co, r + 4*(2-ky'), c + 4*(2-kx')]
        wr = self.w_up.reshape(in_size, out_size, 3, 4, 3, 4)[:, :, ::-1, :, ::-1, :]
        # axes: (ci, co, ky', r, kx', c) -> (ky', kx', ci, r, c, co)
        self.w_up_gemm = jnp.transpose(wr, (2, 4, 0, 3, 5, 1)).reshape(
            9 * in_size, 16 * out_size).astype(jnp.bfloat16)
        self.b_up_gemm = jnp.tile(self.b_up, 16).reshape(1, 16 * out_size)   # f32

        # --- 3x3 conv weights arranged (kernel-pos, concat-in-channel, out-channel) ---
        self.w_c_k = jnp.transpose(self.w_c, (2, 3, 1, 0)).reshape(
            9, cat_ch, out_size).astype(jnp.bfloat16)
        self.b_c_k = self.b_c.reshape(1, out_size)                            # f32

    def __call__(self, high_feature, *low_feature):
        srcs = (high_feature,) + tuple(low_feature)
        S = len(srcs)
        assert S == self.n_concat, (S, self.n_concat)
        B, Cin, H, W = high_feature.shape
        Cout = self.out_size
        Hup, Wup = 4 * H + 4, 4 * W + 4
        Hp, Wp = Hup + 2, Wup + 2
        K2 = S * Cout

        # ---- Stage 1: phase-decomposed ConvTranspose as one bf16 GEMM (shared weights
        #      -> all sources batched into the same pallas_call) ----
        x = jnp.concatenate([jnp.transpose(s, (0, 2, 3, 1)) for s in srcs],
                            axis=0).astype(jnp.bfloat16)            # (S*B, H, W, Cin)
        xp = jnp.pad(x, ((0, 0), (2, 2), (2, 2), (0, 0)))            # (S*B, H+4, W+4, Cin)
        # im2col of the 3x3 phase window — done in XLA on the SMALL (un-stuffed) input.
        patches = jnp.concatenate(
            [xp[:, ky:ky + H + 2, kx:kx + W + 2, :] for ky in range(3) for kx in range(3)],
            axis=-1)                                                  # (S*B, H+2, W+2, 9Cin)
        M, K1, N = (H + 2) * (W + 2), 9 * Cin, 16 * Cout
        patches = patches.reshape(S * B, M, K1)
        TM = min(512, _round_up(M, 8))
        Mp = _round_up(M, TM)
        if Mp != M:
            patches = jnp.pad(patches, ((0, 0), (0, Mp - M), (0, 0)))
        TN = N if N <= 512 else next((t for t in (512, 256, 128) if N % t == 0), N)

        vmem1 = 4 * (TM * K1 + K1 * TN + TM * TN) * 2 + 4 * TN * 4 + (2 << 20)
        up16 = pl.pallas_call(
            _up_gemm_kernel,
            out_shape=jax.ShapeDtypeStruct((S * B, Mp, N), jnp.bfloat16),
            grid=(S * B, Mp // TM, N // TN),
            in_specs=[
                pl.BlockSpec((None, TM, K1), lambda b, m, n: (b, m, 0)),
                pl.BlockSpec((K1, TN), lambda b, m, n: (0, n)),
                pl.BlockSpec((1, TN), lambda b, m, n: (0, n)),
            ],
            out_specs=pl.BlockSpec((None, TM, TN), lambda b, m, n: (b, m, n)),
            compiler_params=pltpu.CompilerParams(
                dimension_semantics=("parallel", "parallel", "parallel"),
                vmem_limit_bytes=int(min(64 << 20, max(32 << 20, vmem1)))),
        )(patches, self.w_up_gemm, self.b_up_gemm)

        # ---- pixel-shuffle the 16 phases back to spatial, FOLD the concat axis into the
        #      channel dim (rides the same transpose), crop to the valid deconv output and
        #      add the conv's +1 zero ring (all in bf16, half the HBM bytes). ----
        up = up16[:, :M].reshape(S, B, H + 2, W + 2, 4, 4, Cout)
        up = jnp.transpose(up, (1, 2, 4, 3, 5, 0, 6))        # (B, H+2, 4, W+2, 4, S, Cout)
        up = up.reshape(B, 4 * (H + 2), 4 * (W + 2), K2)
        up = up[:, 2:2 + Hup, 2:2 + Wup, :]                   # valid ConvTranspose window
        up = jnp.pad(up, ((0, 0), (1, 1), (1, 1), (0, 0)))    # (B, Hp, Wp, S*Cout) bf16

        # ---- Stage 2: fused concat + 3x3 conv + bias + ReLU, halo-tiled over rows ----
        TR = next(t for t in (8, 4, 2, 1) if Hup % t == 0)
        WCH = Wup if Wup <= 256 else 256
        kern = functools.partial(_conv3x3_cat_relu_kernel, tr=TR, wup=Wup, wch=WCH)
        vmem2 = (4 * (TR + 2) * Wp * K2 * 2 + 4 * 9 * K2 * Cout * 2
                 + 4 * TR * Wup * Cout * 4 + (8 << 20))
        y = pl.pallas_call(
            kern,
            out_shape=jax.ShapeDtypeStruct((B, Hup, Wup, Cout), jnp.float32),
            grid_spec=pltpu.PrefetchScalarGridSpec(
                num_scalar_prefetch=0,
                grid=(B, Hup // TR),
                in_specs=[
                    pl.BlockSpec(memory_space=pl.ANY),                    # stays in HBM
                    pl.BlockSpec((9, K2, Cout), lambda b, i: (0, 0, 0)),  # resident VMEM
                    pl.BlockSpec((1, Cout), lambda b, i: (0, 0)),
                ],
                out_specs=pl.BlockSpec((None, TR, Wup, Cout), lambda b, i: (b, i, 0, 0)),
                scratch_shapes=[
                    pltpu.VMEM((2, TR + 2, Wp, K2), jnp.bfloat16),        # halo slabs
                    pltpu.SemaphoreType.DMA((2,)),
                ]),
            compiler_params=pltpu.CompilerParams(
                dimension_semantics=("parallel", "arbitrary"),
                vmem_limit_bytes=int(min(64 << 20, max(32 << 20, vmem2)))),
        )(up, self.w_c_k, self.b_c_k)

        # Consumer is the PyTorch-semantics module -> NCHW output is required.
        return jnp.transpose(y, (0, 3, 1, 2))


def _ref_unet_up(m, high, *lows):
    """Pure-JAX f32 reference mirroring the PyTorch forward exactly (NCHW)."""
    dn = ("NCHW", "OIHW", "NCHW")

    def up_ref(x):
        w = jnp.transpose(m.w_up[:, :, ::-1, ::-1], (1, 0, 2, 3))   # (out, in, 12, 12)
        y = jax.lax.conv_general_dilated(
            x, w, window_strides=(1, 1), padding=((9, 9), (9, 9)),
            lhs_dilation=(4, 4), dimension_numbers=dn)
        return y + m.b_up[None, :, None, None]

    out = up_ref(high)
    for f in lows:
        out = jnp.concatenate([out, up_ref(f)], axis=1)
    y = jax.lax.conv_general_dilated(out, m.w_c, (1, 1), ((1, 1), (1, 1)),
                                     dimension_numbers=dn)
    return jnp.maximum(y + m.b_c[None, :, None, None], 0.0)


if __name__ == "__main__":
    key = jax.random.PRNGKey(0)
    kp, khf, klf = jax.random.split(key, 3)
    in_size, out_size = 4, 4
    B, H, W = 2, 8, 8

    model = UnetUpPallas(in_size, out_size, kp)
    high = jax.random.normal(khf, (B, in_size, H, W), jnp.float32)
    low = jax.random.normal(klf, (B, in_size, H, W), jnp.float32)

    out = jax.block_until_ready(model(high, low))
    assert out.shape == (B, out_size, 4 * H + 4, 4 * W + 4), out.shape

    ref = _ref_unet_up(model, high, low)
    err = float(jnp.max(jnp.abs(out - ref)))
    # bf16 MXU operands (f32 accumulation) -> loosened tolerance vs the f32 reference.
    if not jnp.allclose(out, ref, rtol=5e-2, atol=5e-2):
        raise AssertionError(f"mismatch vs reference: max|diff| = {err}")
    print("KERNEL_OK")
</pallas_src>

<mosaic_0001>
module attributes {stable_mosaic.version = 11 : i64} {
  func.func @_up_gemm_kernel(%arg0: i32, %arg1: i32, %arg2: i32, %arg3: memref<1x104x36xbf16, #tpu.memory_space<vmem>>, %arg4: memref<36x64xbf16, #tpu.memory_space<vmem>>, %arg5: memref<1x64xf32, #tpu.memory_space<vmem>>, %arg6: memref<1x104x64xbf16, #tpu.memory_space<vmem>>) attributes {dimension_semantics = [#tpu.dimension_semantics<parallel>, #tpu.dimension_semantics<parallel>, #tpu.dimension_semantics<parallel>], iteration_bounds = array<i64: 4, 1, 1>, scalar_prefetch = 0 : i64, scratch_operands = 0 : i64, tpu.core_type = #tpu.core_type<tc>, window_params = [{transform_indices = @transform_0, window_bounds = array<i64: 1, 104, 36>}, {transform_indices = @transform_1, window_bounds = array<i64: 36, 64>}, {transform_indices = @transform_2, window_bounds = array<i64: 1, 64>}, {transform_indices = @transform_3, window_bounds = array<i64: 1, 104, 64>}]} {
    %c0 = arith.constant 0 : index
    %c0_0 = arith.constant 0 : index
    %c0_1 = arith.constant 0 : index
    %0 = vector.load %arg3[%c0, %c0_0, %c0_1] : memref<1x104x36xbf16, #tpu.memory_space<vmem>>, vector<1x104x36xbf16>
    %1 = vector.shape_cast %0 : vector<1x104x36xbf16> to vector<104x36xbf16>
    %c0_2 = arith.constant 0 : index
    %c0_3 = arith.constant 0 : index
    %2 = vector.load %arg4[%c0_2, %c0_3] : memref<36x64xbf16, #tpu.memory_space<vmem>>, vector<36x64xbf16>
    %cst = arith.constant dense<0.000000e+00> : vector<104x64xf32>
    %3 = tpu.matmul %1, %2, %cst {dimension_numbers = #tpu.dot_dimension_numbers<[1], [0], [0], [1], [0, 0, 1, 1], [], []>} : vector<104x36xbf16>, vector<36x64xbf16>, vector<104x64xf32> -> vector<104x64xf32>
    %c0_4 = arith.constant 0 : index
    %c0_5 = arith.constant 0 : index
    %4 = vector.load %arg5[%c0_4, %c0_5] : memref<1x64xf32, #tpu.memory_space<vmem>>, vector<1x64xf32>
    %5 = vector.broadcast %4 : vector<1x64xf32> to vector<104x64xf32>
    %6 = arith.addf %3, %5 : vector<104x64xf32>
    %7 = arith.truncf %6 : vector<104x64xf32> to vector<104x64xbf16>
    %c0_6 = arith.constant 0 : index
    %c0_7 = arith.constant 0 : index
    %c0_8 = arith.constant 0 : index
    %8 = vector.load %arg6[%c0_6, %c0_7, %c0_8] : memref<1x104x64xbf16, #tpu.memory_space<vmem>>, vector<1x104x64xbf16>
    %9 = vector.shape_cast %8 : vector<1x104x64xbf16> to vector<104x64xbf16>
    %10 = vector.shape_cast %7 : vector<104x64xbf16> to vector<1x104x64xbf16>
    tpu.vector_store %arg6[%c0_6, %c0_7, %c0_8], %10 {strides = array<i32>} : memref<1x104x64xbf16, #tpu.memory_space<vmem>>, vector<1x104x64xbf16>,
    return
  }
  func.func @transform_0(%arg0: i32, %arg1: i32, %arg2: i32) -> (i32, i32, i32) {
    %c0_i32 = arith.constant 0 : i32
    %c0_i32_0 = arith.constant 0 : i32
    return %arg0, %arg1, %c0_i32 : i32, i32, i32
  }
  func.func @transform_1(%arg0: i32, %arg1: i32, %arg2: i32) -> (i32, i32) {
    %c0_i32 = arith.constant 0 : i32
    %c0_i32_0 = arith.constant 0 : i32
    return %c0_i32, %arg2 : i32, i32
  }
  func.func @transform_2(%arg0: i32, %arg1: i32, %arg2: i32) -> (i32, i32) {
    %c0_i32 = arith.constant 0 : i32
    %c0_i32_0 = arith.constant 0 : i32
    return %c0_i32, %arg2 : i32, i32
  }
  func.func @transform_3(%arg0: i32, %arg1: i32, %arg2: i32) -> (i32, i32, i32) {
    %c0_i32 = arith.constant 0 : i32
    return %arg0, %arg1, %arg2 : i32, i32, i32
  }
}

</mosaic_0001>

<llo_original>
// kernel: tpu_custom_call.1
$region0: #{tpu_custom_call.1}
  #allocation0 [shape = 'u32[]', space=smem, size = 0x4, offset = 0x4, fixed_abs, tag = 'smem constant byte address 0x4 - core index']
  #allocation1 [shape = 'u32[72,128]{1,0:T(1,128)}', space=vmem, size = 0x9000, scoped, tag = 'internal scratch']
  %s0 = inlined_call_operand.vmem [shape: bf16[4,104,36], index: 0, kind: input, shape index: {}]
  %s1 = inlined_call_operand.vmem [shape: bf16[36,64], index: 1, kind: input, shape index: {}]
  %s2 = inlined_call_operand.vmem [shape: f32[1,64], index: 2, kind: input, shape index: {}]
  %s3 = inlined_call_operand.vmem [shape: bf16[4,104,64], index: 3, kind: output, shape index: {}]
  %s4 = sld [smem:[#allocation0]]
  $region45: #{tpu_custom_call.1} parent=0
    _
  %s6 = ssub.s32 1, %s4
  %s7 = scalar_select 0, %s6, %s4
  loop: start=0, step=1, limit=6
  $region2: #{tpu_custom_call.1} parent=0 // loop_pre_header
    _
  $region3: #{tpu_custom_call.1} parent=0 // loop_header
    %s9 = sphi 0, %s13
    %p10 = scmp.ge.s32.totalorder %s9, 6
    %s16 = sphi 0, %s35
    %s17 = sphi 0, %s31
    %s18 = sphi 0, %s27
    %s19 = sphi 0, %s16
    %s20 = sphi 0, %s17
    %s21 = sphi 0, %s18
    %s22 = sphi 0, %s19
    %s23 = sphi 0, %s20
    %s24 = sphi 0, %s21
    %s40 = sphi 0, %s42
    %s43 = sphi 0, %s40
    %s44 = sphi 0, %s43
    %s60 = sphi 0, %s44
    %s66 = sphi 0, %s68
    %s69 = sphi 0, %s66
    %s70 = sphi 0, %s69
    %s86 = sphi 0, %s70
    %s92 = sphi 0, %s94
    %s95 = sphi 0, %s92
    %s96 = sphi 0, %s95
    %s112 = sphi 0, %s96
    %s122 = sphi 0, %s124
    %s125 = sphi 0, %s122
    %s126 = sphi 0, %s125
    %s142 = sphi 0, %s126
  $region4: #{tpu_custom_call.1} parent=0 // loop_header_branch
    %12 = sbr.rel (%p10) target = $region8
  $region5: #{tpu_custom_call.1} parent=0 // loop_body
    %s14 = ssub.s32 %s9, 1
    %s15 = ssub.s32 %s9, 2
    %s25 = sadd.s32 1, %s18
    %p26 = scmp.ge.s32.totalorder %s25, 1
    %s27 = scalar_select %p26, 0, %s25
    %s28 = sadd.s32 1, %s17
    %s29 = scalar_select %p26, %s28, %s17
    %p30 = scmp.ge.s32.totalorder %s29, 1
    %s31 = scalar_select %p30, 0, %s29
    %s32 = sadd.s32 1, %s16
    %s33 = scalar_select %p30, %s32, %s16
    %p34 = scmp.ge.s32.totalorder %s33, 4
    %s35 = scalar_select %p34, 0, %s33
    %s36 = ssub.s32 %s16, %s35
    %s37 = ssub.s32 %s17, %s31
    %s38 = sor.u32 %s36, %s37
    %p39 = scmp.eq.s32.totalorder %s38, 0
    %s41 = sadd.s32 %s40, 1
    %s42 = scalar_select %p39, %s40, %s41
    %p45 = pneg %p39
    %p46 = scmp.eq.s32.totalorder %s9, 3
    %p47 = por %p45, %p46
    %p48 = scmp.ne.s32.totalorder %s40, %s43
    %p49 = scmp.eq.s32.totalorder %s9, 0
    %p50 = por %p48, %p49
    %p51 = scmp.ne.s32.totalorder %s40, %s43
    %p52 = scmp.eq.s32.totalorder %s14, 3
    %p53 = por %p51, %p52
    %p54 = scmp.ne.s32.totalorder %s43, %s44
    %p55 = scmp.eq.s32.totalorder %s14, 0
    %p56 = por %p54, %p55
    %p57 = scmp.ne.s32.totalorder %s43, %s44
    %p58 = scmp.eq.s32.totalorder %s15, 3
    %p59 = por %p57, %p58
    %p61 = scmp.ne.s32.totalorder %s44, %s60
    %p62 = scmp.eq.s32.totalorder %s15, 0
    %p63 = por %p61, %p62
    %s64 = ssub.s32 %s18, %s27
    %p65 = scmp.eq.s32.totalorder %s64, 0
    %s67 = sadd.s32 %s66, 1
    %s68 = scalar_select %p65, %s66, %s67
    %p71 = pneg %p65
    %p72 = scmp.eq.s32.totalorder %s9, 3
    %p73 = por %p71, %p72
    %p74 = scmp.ne.s32.totalorder %s66, %s69
    %p75 = scmp.eq.s32.totalorder %s9, 0
    %p76 = por %p74, %p75
    %p77 = scmp.ne.s32.totalorder %s66, %s69
    %p78 = scmp.eq.s32.totalorder %s14, 3
    %p79 = por %p77, %p78
    %p80 = scmp.ne.s32.totalorder %s69, %s70
    %p81 = scmp.eq.s32.totalorder %s14, 0
    %p82 = por %p80, %p81
    %p83 = scmp.ne.s32.totalorder %s69, %s70
    %p84 = scmp.eq.s32.totalorder %s15, 3
    %p85 = por %p83, %p84
    %p87 = scmp.ne.s32.totalorder %s70, %s86
    %p88 = scmp.eq.s32.totalorder %s15, 0
    %p89 = por %p87, %p88
    %s90 = ssub.s32 %s18, %s27
    %p91 = scmp.eq.s32.totalorder %s90, 0
    %s93 = sadd.s32 %s92, 1
    %s94 = scalar_select %p91, %s92, %s93
    %p97 = pneg %p91
    %p98 = scmp.eq.s32.totalorder %s9, 3
    %p99 = por %p97, %p98
    %p100 = scmp.ne.s32.totalorder %s92, %s95
    %p101 = scmp.eq.s32.totalorder %s9, 0
    %p102 = por %p100, %p101
    %p103 = scmp.ne.s32.totalorder %s92, %s95
    %p104 = scmp.eq.s32.totalorder %s14, 3
    %p105 = por %p103, %p104
    %p106 = scmp.ne.s32.totalorder %s95, %s96
    %p107 = scmp.eq.s32.totalorder %s14, 0
    %p108 = por %p106, %p107
    %p109 = scmp.ne.s32.totalorder %s95, %s96
    %p110 = scmp.eq.s32.totalorder %s15, 3
    %p111 = por %p109, %p110
    %p113 = scmp.ne.s32.totalorder %s96, %s112
    %p114 = scmp.eq.s32.totalorder %s15, 0
    %p115 = por %p113, %p114
    %s116 = ssub.s32 %s16, %s35
    %s117 = ssub.s32 %s17, %s31
    %s118 = sor.u32 %s116, %s117
    %s119 = ssub.s32 %s18, %s27
    %s120 = sor.u32 %s118, %s119
    %p121 = scmp.eq.s32.totalorder %s120, 0
    %s123 = sadd.s32 %s122, 1
    %s124 = scalar_select %p121, %s122, %s123
    %p127 = pneg %p121
    %p128 = scmp.eq.s32.totalorder %s9, 3
    %p129 = por %p127, %p128
    %p130 = scmp.ne.s32.totalorder %s122, %s125
    %p131 = scmp.eq.s32.totalorder %s9, 0
    %p132 = por %p130, %p131
    %p133 = scmp.ne.s32.totalorder %s122, %s125
    %p134 = scmp.eq.s32.totalorder %s14, 3
    %p135 = por %p133, %p134
    %p136 = scmp.ne.s32.totalorder %s125, %s126
    %p137 = scmp.eq.s32.totalorder %s14, 0
    %p138 = por %p136, %p137
    %p139 = scmp.ne.s32.totalorder %s125, %s126
    %p140 = scmp.eq.s32.totalorder %s15, 3
    %p141 = por %p139, %p140
    %p143 = scmp.ne.s32.totalorder %s126, %s142
    %p144 = scmp.eq.s32.totalorder %s15, 0
    %p145 = por %p143, %p144
    %p146 = scmp.le.s32.totalorder 1, %s9
    %p147 = scmp.lt.s32.totalorder %s9, 5
    %p148 = pnand %p146, %p147
    %p149 = pneg %p148
    // Predicated region
    $region9: #{tpu_custom_call.1} parent=5 // pred_check
      _
    $region10: #{tpu_custom_call.1} parent=5 // pred_check_branch
      %151 = sbr.rel (%p148) target = $region12
    $region11: #{tpu_custom_call.1} parent=5 // pred_region
      %s152 = ssub.s32 %s9, 1
      // Predicated region
      $region13: #{tpu_custom_call.1} parent=11 // pred_check
        %p153 = pneg %p82
      $region14: #{tpu_custom_call.1} parent=11 // pred_check_branch
        %155 = sbr.rel (%p153) target = $region16
      $region15: #{tpu_custom_call.1} parent=11 // pred_region
        %p156 = scmp.lt.s32.totalorder %s21, 0
        %s157 = scalar_select %p156, %s21, 0
        %s158 = smul.addr %s157, 4
        %s159 = scalar_lea.vmem %s1, %s158
      $region16: #{tpu_custom_call.1} parent=11 // pred_fallthru
        _
      // Predicated region
      $region17: #{tpu_custom_call.1} parent=11 // pred_check
        %p160 = pneg %p108
      $region18: #{tpu_custom_call.1} parent=11 // pred_check_branch
        %162 = sbr.rel (%p160) target = $region20
      $region19: #{tpu_custom_call.1} parent=11 // pred_region
        %p163 = scmp.lt.s32.totalorder %s21, 0
        %s164 = scalar_select %p163, %s21, 0
        %s165 = scalar_lea.vmem %s2, %s164
      $region20: #{tpu_custom_call.1} parent=11 // pred_fallthru
        _
    $region12: #{tpu_custom_call.1} parent=5 // pred_fallthru
      _
    %p166 = scmp.lt.s32.totalorder %s9, 4
    // Predicated region
    $region21: #{tpu_custom_call.1} parent=5 // pred_check
      %p167 = pneg %p166
    $region22: #{tpu_custom_call.1} parent=5 // pred_check_branch
      %169 = sbr.rel (%p167) target = $region24
    $region23: #{tpu_custom_call.1} parent=5 // pred_region
      // Predicated region
      $region25: #{tpu_custom_call.1} parent=23 // pred_check
        %p170 = pneg %p50
      $region26: #{tpu_custom_call.1} parent=23 // pred_check_branch
        %172 = sbr.rel (%p170) target = $region28
      $region27: #{tpu_custom_call.1} parent=23 // pred_region
        %s173 = smul.u32 13, %s17
        %p174 = scmp.lt.s32.totalorder %s16, 3
        %s175 = scalar_select %p174, %s16, 3
        %p176 = scmp.lt.s32.totalorder %s173, 12
        %s177 = scalar_select %p176, %s173, 12
        %s178 = smul.addr %s175, 13
        %s179 = sadd.s32 %s177, %s178
        %s180 = smul.addr %s179, 4
        %s181 = scalar_lea.vmem %s0, %s180
        %s182 = smul.u32 13, %s17
      $region28: #{tpu_custom_call.1} parent=23 // pred_fallthru
        _
    $region24: #{tpu_custom_call.1} parent=5 // pred_fallthru
      _
    %p183 = scmp.le.s32.totalorder 1, %s9
    %p184 = scmp.lt.s32.totalorder %s9, 5
    %p185 = pnand %p183, %p184
    %p186 = pneg %p185
    // Predicated region
    $region29: #{tpu_custom_call.1} parent=5 // pred_check
      _
    $region30: #{tpu_custom_call.1} parent=5 // pred_check_branch
      %188 = sbr.rel (%p185) target = $region32
    $region31: #{tpu_custom_call.1} parent=5 // pred_region
      %s189 = ssub.s32 %s9, 1
      %s190 = smul.u32 13, %s20
      %p191 = scmp.lt.s32.totalorder %s19, 3
      %s192 = scalar_select %p191, %s19, 3
      %p193 = scmp.lt.s32.totalorder %s190, 12
      %s194 = scalar_select %p193, %s190, 12
      %s195 = smul.addr %s192, 13
      %s196 = sadd.s32 %s194, %s195
      %s197 = smul.addr %s196, 4
      %s198 = scalar_lea.vmem %s0, %s197
      %p199 = pneg %p56
      %p200 = pneg %p53
      %p201 = scmp.lt.s32.totalorder %s21, 0
      %s202 = scalar_select %p201, %s21, 0
      %s203 = smul.addr %s202, 4
      %s204 = scalar_lea.vmem %s1, %s203
      %p205 = pneg %p82
      %p206 = pneg %p79
      %p207 = scmp.lt.s32.totalorder %s21, 0
      %s208 = scalar_select %p207, %s21, 0
      %s209 = scalar_lea.vmem %s2, %s208
      %p210 = pneg %p108
      %p211 = pneg %p105
      %p212 = pneg %p138
      %p213 = pneg %p135
      %s214 = smul.u32 13, %s20
      %p215 = scmp.lt.s32.totalorder %s19, 3
      %s216 = scalar_select %p215, %s19, 3
      %p217 = scmp.lt.s32.totalorder %s214, 12
      %s218 = scalar_select %p217, %s214, 12
      %p219 = scmp.lt.s32.totalorder %s21, 0
      %s220 = scalar_select %p219, %s21, 0
      %s221 = sadd.s32 %s220, %s218
      %s222 = smul.addr %s216, 13
      %s223 = sadd.s32 %s221, %s222
      %s224 = smul.addr %s223, 4
      %s225 = scalar_lea.vmem %s3, %s224
      %s226 = smul.u32 13, %s20
      %p227 = scmp.lt.s32.totalorder %s19, 3
      %s228 = scalar_select %p227, %s19, 3
      %p229 = scmp.lt.s32.totalorder %s226, 12
      %s230 = scalar_select %p229, %s226, 12
      %s231 = smul.addr %s228, 13
      %s232 = sadd.s32 %s230, %s231
      %s233 = smul.addr %s232, 4
      %s234 = scalar_lea.vmem %s0, %s233
      %s235 = smul.u32 13, %s20
      %p236 = scmp.lt.s32.totalorder %s21, 0
      %s237 = scalar_select %p236, %s21, 0
      %s238 = smul.addr %s237, 4
      %s239 = scalar_lea.vmem %s1, %s238
      %p240 = scmp.lt.s32.totalorder %s21, 0
      %s241 = scalar_select %p240, %s21, 0
      %s242 = scalar_lea.vmem %s2, %s241
      %s243 = smul.u32 13, %s20
      %p244 = scmp.lt.s32.totalorder %s19, 3
      %s245 = scalar_select %p244, %s19, 3
      %p246 = scmp.lt.s32.totalorder %s243, 12
      %s247 = scalar_select %p246, %s243, 12
      %p248 = scmp.lt.s32.totalorder %s21, 0
      %s249 = scalar_select %p248, %s21, 0
      %s250 = sadd.s32 %s249, %s247
      %s251 = smul.addr %s245, 13
      %s252 = sadd.s32 %s250, %s251
      %s253 = smul.addr %s252, 4
      %s254 = scalar_lea.vmem %s3, %s253
      %s255 = smul.u32 13, %s20
      %v257 = vld [vmem:[%s234] sm:$0xf]
      %v258 = vld [vmem:[%s234 + $0x4] sm:$0xf]
      %v259 = vld [vmem:[%s234 + $0x8] sm:$0xf]
      %v260 = vld [vmem:[%s234 + $0xc] sm:$0xf]
      %v261 = vld [vmem:[%s234 + $0x10] sm:$0xf]
      %v262 = vld [vmem:[%s234 + $0x14] sm:$0xf]
      %v263 = vld [vmem:[%s234 + $0x18] sm:$0xf]
      %v264 = vld [vmem:[%s234 + $0x1c] sm:$0xf]
      %v265 = vld [vmem:[%s234 + $0x20] sm:$0xf]
      %v266 = vld [vmem:[%s234 + $0x24] sm:$0xf]
      %v267 = vld [vmem:[%s234 + $0x28] sm:$0xf]
      %v268 = vld [vmem:[%s234 + $0x2c] sm:$0xf]
      %v269 = vld [vmem:[%s234 + $0x30] sm:$0xf]
      %v270 = vld [vmem:[%s239] sm:$0xf]
      %v271 = vld [vmem:[%s239 + $0x4] sm:$0xf]
      %v272 = vld [vmem:[%s239 + $0x8] sm:$0xf]
      %v273 = vld [vmem:[%s239 + $0xc] sm:$0xf]
      %v274 = vld [vmem:[%s239 + $0x10] sm:$0x3]
      %v275 = vld [vmem:[%s242] sm:$0x1]
      %v277 = vperm.slane %v275, 0
      %v292 = vunpack.c.l.b16 %v257
      %v293 = vunpack.c.l.b16 %v258
      %v294 = vunpack.c.l.b16 %v259
      %v295 = vunpack.c.l.b16 %v260
      %v296 = vunpack.c.l.b16 %v261
      %v297 = vunpack.c.l.b16 %v262
      %v298 = vunpack.c.l.b16 %v263
      %v299 = vunpack.c.l.b16 %v264
      %v300 = vunpack.c.l.b16 %v265
      %v301 = vunpack.c.l.b16 %v266
      %v302 = vunpack.c.l.b16 %v267
      %v303 = vunpack.c.l.b16 %v268
      %v304 = vunpack.c.l.b16 %v269
      %v305 = vpack.c.b16 %v293, %v292
      %v306 = vpack.c.b16 %v295, %v294
      %v307 = vpack.c.b16 %v297, %v296
      %v308 = vpack.c.b16 %v299, %v298
      %v309 = vpack.c.b16 %v301, %v300
      %v310 = vpack.c.b16 %v303, %v302
      %v311 = vpack.c.b16 %v304, %v304
      %v317 = vunpack.c.l.b16 %v270
      %v318 = vunpack.c.l.b16 %v271
      %v319 = vunpack.c.l.b16 %v272
      %v320 = vunpack.c.l.b16 %v273
      %v321 = vunpack.c.l.b16 %v274
      %v322 = vpack.c.b16 %v318, %v317
      %v323 = vpack.c.b16 %v320, %v319
      %v324 = vpack.c.b16 %v321, %v321
      %vm327 = vcmask 293888
      %v329 = vsel %vm327, %v305, 0
      %v332 = vsel %vm327, %v306, 0
      %v335 = vsel %vm327, %v307, 0
      %v338 = vsel %vm327, %v308, 0
      %v341 = vsel %vm327, %v309, 0
      %v344 = vsel %vm327, %v310, 0
      %v347 = vsel %vm327, %v311, 0
      %vm349 = vcmask 1041408
      %v351 = vsel %vm349, %v324, 0
      %353 = vmatpush.bf16.msra.mxu0 0
      %354 = vmatpush.bf16.msra.mxu0 0
      %355 = vmatpush.bf16.msra.mxu0 0
      %356 = vmatpush.bf16.msra.mxu0 0
      %357 = vmatpush.bf16.msra.mxu0 0
      %358 = vmatpush.bf16.msra.mxu0 %v351
      %359 = vmatpush.bf16.msra.mxu0 %v323
      %360 = vmatpush.bf16.msra.mxu0 %v322
      %361 = vmatmul.bf16.gmra.mxu0 %v329
      %v362 = vpop.f32.mrf.mxu0
      %v363 = vadd.f32 %v277, %v362
      %v364 = vpop.f32.mrf.mxu0
      %v365 = vadd.f32 %v277, %v364
      %366 = vmatmul.bf16.gmra.mxu0 %v332
      %v367 = vpop.f32.mrf.mxu0
      %v368 = vadd.f32 %v277, %v367
      %v369 = vpop.f32.mrf.mxu0
      %v370 = vadd.f32 %v277, %v369
      %371 = vmatmul.bf16.gmra.mxu0 %v335
      %v372 = vpop.f32.mrf.mxu0
      %v373 = vadd.f32 %v277, %v372
      %v374 = vpop.f32.mrf.mxu0
      %v375 = vadd.f32 %v277, %v374
      %376 = vmatmul.bf16.gmra.mxu0 %v338
      %v377 = vpop.f32.mrf.mxu0
      %v378 = vadd.f32 %v277, %v377
      %v379 = vpop.f32.mrf.mxu0
      %v380 = vadd.f32 %v277, %v379
      %381 = vmatmul.bf16.gmra.mxu0 %v341
      %v382 = vpop.f32.mrf.mxu0
      %v383 = vadd.f32 %v277, %v382
      %v384 = vpop.f32.mrf.mxu0
      %v385 = vadd.f32 %v277, %v384
      %386 = vmatmul.bf16.gmra.mxu0 %v344
      %v387 = vpop.f32.mrf.mxu0
      %v388 = vadd.f32 %v277, %v387
      %v389 = vpop.f32.mrf.mxu0
      %v390 = vadd.f32 %v277, %v389
      %391 = vmatmul.bf16.gmra.mxu0 %v347
      %v392 = vpop.f32.mrf.mxu0
      %v393 = vadd.f32 %v277, %v392
      %v394 = vpop.f32.mrf.mxu0
      %395 = vdwg.mxu0
      %v396 = vpack.c.bf16 %v363, %v363
      %v397 = vpack.c.bf16 %v365, %v365
      %v398 = vpack.c.bf16 %v368, %v368
      %v399 = vpack.c.bf16 %v370, %v370
      %v400 = vpack.c.bf16 %v373, %v373
      %v401 = vpack.c.bf16 %v375, %v375
      %v402 = vpack.c.bf16 %v378, %v378
      %v403 = vpack.c.bf16 %v380, %v380
      %v404 = vpack.c.bf16 %v383, %v383
      %v405 = vpack.c.bf16 %v385, %v385
      %v406 = vpack.c.bf16 %v388, %v388
      %v407 = vpack.c.bf16 %v390, %v390
      %v408 = vpack.c.bf16 %v393, %v393
      %vm409 = vcmask 519168
      %410 = vst.msk [vmem:[%s254] sm:$0xf] %vm409, %v396
      %411 = vst.msk [vmem:[%s254 + $0x4] sm:$0xf] %vm409, %v397
      %412 = vst.msk [vmem:[%s254 + $0x8] sm:$0xf] %vm409, %v398
      %413 = vst.msk [vmem:[%s254 + $0xc] sm:$0xf] %vm409, %v399
      %414 = vst.msk [vmem:[%s254 + $0x10] sm:$0xf] %vm409, %v400
      %415 = vst.msk [vmem:[%s254 + $0x14] sm:$0xf] %vm409, %v401
      %416 = vst.msk [vmem:[%s254 + $0x18] sm:$0xf] %vm409, %v402
      %417 = vst.msk [vmem:[%s254 + $0x1c] sm:$0xf] %vm409, %v403
      %418 = vst.msk [vmem:[%s254 + $0x20] sm:$0xf] %vm409, %v404
      %419 = vst.msk [vmem:[%s254 + $0x24] sm:$0xf] %vm409, %v405
      %420 = vst.msk [vmem:[%s254 + $0x28] sm:$0xf] %vm409, %v406
      %421 = vst.msk [vmem:[%s254 + $0x2c] sm:$0xf] %vm409, %v407
      %422 = vst.msk [vmem:[%s254 + $0x30] sm:$0xf] %vm409, %v408
      %s423 = smul.u32 13, %s20
      %p424 = scmp.lt.s32.totalorder %s19, 3
      %s425 = scalar_select %p424, %s19, 3
      %p426 = scmp.lt.s32.totalorder %s423, 12
      %s427 = scalar_select %p426, %s423, 12
      %p428 = scmp.lt.s32.totalorder %s21, 0
      %s429 = scalar_select %p428, %s21, 0
      %s430 = sadd.s32 %s429, %s427
      %s431 = smul.addr %s425, 13
      %s432 = sadd.s32 %s430, %s431
      %s433 = smul.addr %s432, 4
      %s434 = scalar_lea.vmem %s3, %s433
      // Predicated region
      $region33: #{tpu_custom_call.1} parent=31 // pred_check
        %p435 = pneg %p135
      $region34: #{tpu_custom_call.1} parent=31 // pred_check_branch
        %437 = sbr.rel (%p435) target = $region36
      $region35: #{tpu_custom_call.1} parent=31 // pred_region
        %s438 = smul.u32 13, %s20
      $region36: #{tpu_custom_call.1} parent=31 // pred_fallthru
        _
    $region32: #{tpu_custom_call.1} parent=5 // pred_fallthru
      _
    %p439 = scmp.le.s32.totalorder 2, %s9
    // Predicated region
    $region37: #{tpu_custom_call.1} parent=5 // pred_check
      %p440 = pneg %p439
    $region38: #{tpu_custom_call.1} parent=5 // pred_check_branch
      %442 = sbr.rel (%p440) target = $region40
    $region39: #{tpu_custom_call.1} parent=5 // pred_region
      %s443 = ssub.s32 %s9, 2
      // Predicated region
      $region41: #{tpu_custom_call.1} parent=39 // pred_check
        %p444 = pneg %p141
      $region42: #{tpu_custom_call.1} parent=39 // pred_check_branch
        %446 = sbr.rel (%p444) target = $region44
      $region43: #{tpu_custom_call.1} parent=39 // pred_region
        %s447 = smul.u32 13, %s23
        %p448 = scmp.lt.s32.totalorder %s22, 3
        %s449 = scalar_select %p448, %s22, 3
        %p450 = scmp.lt.s32.totalorder %s447, 12
        %s451 = scalar_select %p450, %s447, 12
        %p452 = scmp.lt.s32.totalorder %s24, 0
        %s453 = scalar_select %p452, %s24, 0
        %s454 = sadd.s32 %s453, %s451
        %s455 = smul.addr %s449, 13
        %s456 = sadd.s32 %s454, %s455
        %s457 = smul.addr %s456, 4
        %s458 = scalar_lea.vmem %s3, %s457
      $region44: #{tpu_custom_call.1} parent=39 // pred_fallthru
        _
    $region40: #{tpu_custom_call.1} parent=5 // pred_fallthru
      _
  $region6: #{tpu_custom_call.1} parent=0 // loop_footer
    %s13 = sadd.s32 1, %s9
  $region7: #{tpu_custom_call.1} parent=0 // loop_footer_branch
    %8 = sbr.rel target = $region3
  $region8: #{tpu_custom_call.1} parent=0 // loop_exit
    _

</llo_original>
